<compile_context>
chip_gen: v7x
topology: tpu7x:2x2x1
jax: 0.10.0
libtpu: 0.0.40
codegen_flags: <defaults>
</compile_context>

<pallas_src>
import functools

import jax
import jax.numpy as jnp
import numpy as np
from jax.experimental import pallas as pl
from jax.experimental.pallas import tpu as pltpu


def _cdiv(a, b):
    return -(-a // b)


def _round_up(x, m):
    return _cdiv(x, m) * m


def _edge_loss_kernel(ratio_ref, out_ref, *, margin, use_l2):
    # ratio_ref : (tb, kc, 128) f32 -- ||v1-v0||^2 / e0^2 ; padded entries == 1
    # out_ref   : (1, 1, 1, 128) f32 -- lane-dense per-block partial sums
    delta = 0.5 * jnp.log(ratio_ref[...])            # == log(e1) - log(e0)
    if use_l2:
        dist = jnp.maximum(delta * delta - margin * margin, 0.0)
    else:
        dist = jnp.maximum(jnp.abs(delta) - margin, 0.0)
    # Reduce the batch rows (plain VPU adds over the leading axis), then the
    # chunk (sublane) axis; keep per-lane partial sums so the store is a single
    # unmasked full-vreg write -- no lane iota / select needed.
    per_chunk = jnp.sum(dist, axis=0, keepdims=True)        # (1, kc, 128)
    lane_sums = jnp.sum(per_chunk, axis=1, keepdims=True)   # (1, 1, 128)
    out_ref[...] = lane_sums.reshape(1, 1, 1, 128)


def _choose_batch_tile(B):
    """Batch tile tb and padded batch size (tb divides b_pad)."""
    if B <= 8:
        return B, B                    # block equals full dim -> allowed
    b_pad = _round_up(B, 8)
    for cand in (32, 24, 16, 8):       # let tb grow up to 32 when B > 8
        if cand <= b_pad and b_pad % cand == 0:
            return cand, b_pad
    return 8, b_pad


def _choose_edge_tiling(E, tb, gb, target_block_bytes):
    """Edge-axis tiling in 128-edge lane chunks: (kc per block, ge, n_chunks)."""
    n128 = _cdiv(E, 128)                                    # lane chunks
    target_chunks = max(8, (int(target_block_bytes) // (4 * tb * 128)) // 8 * 8)
    if n128 <= target_chunks:
        # Single edge tile, unless that would leave one v7x TensorCore idle
        # and the problem is big enough that the 8-chunk rounding waste is small.
        ge = 2 if (gb == 1 and n128 >= 32) else 1
    else:
        ge = _cdiv(n128, target_chunks)
    kc = _cdiv(n128, ge)
    if ge > 1:
        kc = _round_up(kc, 8)          # (8, 128) rule for tiled block dims
    return kc, ge, kc * ge


def edge_loss_forward(verts, all_edges, log_e0, *, margin, use_l2=False,
                      target_block_bytes=4 << 20):
    """verts: (B, V, 3); all_edges: (E, 2) int32; log_e0: (E,) -> scalar loss."""
    B = int(verts.shape[0])
    E = int(all_edges.shape[0])

    # Producer (fused by XLA with the gathers): squared edge length scaled by
    # 1/e0^2, so only one 4 B/elem plane reaches the kernel and the kernel
    # needs a single log per element.
    v0 = verts[:, all_edges[:, 0], :].astype(jnp.float32)
    v1 = verts[:, all_edges[:, 1], :].astype(jnp.float32)
    sumsq = jnp.sum((v1 - v0) ** 2, axis=-1)                      # (B, E)
    inv_e0sq = jnp.exp(-2.0 * log_e0.astype(jnp.float32))         # (E,)
    ratio = sumsq * inv_e0sq[None, :]                             # (B, E)

    # Tiling: batch on the leading axis, edges as (chunk, 128-lane) pairs.
    tb, b_pad = _choose_batch_tile(B)
    gb = b_pad // tb
    kc, ge, n_chunks = _choose_edge_tiling(E, tb, gb, target_block_bytes)
    e_pad = n_chunks * 128

    # Pad with 1.0 -> delta = 0 -> zero contribution for the default margins
    # (any residual relu(-margin) for L1 is subtracted analytically below).
    if (b_pad, e_pad) != (B, E):
        ratio = jnp.pad(ratio, ((0, b_pad - B), (0, e_pad - E)),
                        constant_values=1.0)
    ratio = ratio.reshape(b_pad, n_chunks, 128)

    kernel = functools.partial(_edge_loss_kernel,
                               margin=float(margin), use_l2=bool(use_l2))

    partials = pl.pallas_call(
        kernel,
        out_shape=jax.ShapeDtypeStruct((gb, ge, 1, 128), jnp.float32),
        grid_spec=pltpu.PrefetchScalarGridSpec(
            num_scalar_prefetch=0,
            grid=(gb, ge),
            in_specs=[
                pl.BlockSpec((tb, kc, 128), lambda b, t: (b, t, 0)),
            ],
            out_specs=pl.BlockSpec((1, 1, 1, 128), lambda b, t: (b, t, 0, 0)),
        ),
        compiler_params=pltpu.CompilerParams(
            dimension_semantics=("parallel", "parallel")),
    )(ratio)

    # Tree-reduce the per-block, per-lane partial sums in JAX, remove the
    # (analytically known) padding contribution, then take the mean.
    total = jnp.sum(partials)
    n_pad = b_pad * e_pad - B * E
    pad_bias = 0.0 if use_l2 else max(-float(margin), 0.0)
    if n_pad and pad_bias:
        total = total - jnp.float32(n_pad * pad_bias)
    return total / jnp.float32(B * E)


def make_edge_loss_buffers(verts0, faces):
    """Mimics EdgeLoss.__init__: builds all_edges and log_e0 from rest verts."""
    edges0 = faces[:, [0, 1]]
    edges1 = faces[:, [1, 2]]
    edges2 = faces[:, [2, 0]]
    all_edges = jnp.concatenate([edges0, edges1, edges2], axis=0)  # (E, 2)
    v0 = verts0[all_edges[:, 0], :]
    v1 = verts0[all_edges[:, 1], :]
    edge_lengths = jnp.sqrt(jnp.sum((v1 - v0) ** 2, axis=-1))
    log_e0 = jnp.log(edge_lengths)
    return all_edges, log_e0


def _reference_forward(verts, all_edges, log_e0, *, margin, use_l2=False):
    v0 = verts[:, all_edges[:, 0], :]
    v1 = verts[:, all_edges[:, 1], :]
    e1 = jnp.sqrt(jnp.sum((v1 - v0) ** 2, axis=-1))
    delta = jnp.log(e1) - log_e0[None, :]
    if use_l2:
        dist = jax.nn.relu(delta * delta - margin * margin)
    else:
        dist = jax.nn.relu(jnp.abs(delta) - margin)
    return jnp.mean(dist)


def _make_mesh(key, B, V, F, offsets, noise):
    kv, kf, kn = jax.random.split(key, 3)
    verts0 = jax.random.normal(kv, (V, 3), dtype=jnp.float32)
    base = jax.random.randint(kf, (F, 1), 0, V, dtype=jnp.int32)
    faces = (base + jnp.array([offsets], dtype=jnp.int32)) % V   # no degenerate edges
    all_edges, log_e0 = make_edge_loss_buffers(verts0, faces)
    verts = verts0[None] + noise * jax.random.normal(kn, (B, V, 3), dtype=jnp.float32)
    return verts, all_edges, log_e0


if __name__ == "__main__":
    key = jax.random.PRNGKey(0)
    k1, k2, k3 = jax.random.split(key, 3)
    margin = float(np.log(2.0))   # module default margin=2 -> log(2)

    def check(verts, all_edges, log_e0, use_l2, **kw):
        loss = edge_loss_forward(verts, all_edges, log_e0,
                                 margin=margin, use_l2=use_l2, **kw)
        loss = jax.block_until_ready(loss)
        ref = _reference_forward(verts, all_edges, log_e0,
                                 margin=margin, use_l2=use_l2)
        np.testing.assert_allclose(np.asarray(loss), np.asarray(ref),
                                   rtol=1e-5, atol=2e-6)

    # --- Case 1: tiny mesh, single block, B on the leading axis (L1 and L2) --
    verts, all_edges, log_e0 = _make_mesh(k1, B=2, V=16, F=24,
                                          offsets=[0, 3, 7], noise=0.3)
    for use_l2 in (False, True):
        check(verts, all_edges, log_e0, use_l2)

    # --- Case 2: batch padding (B=10 -> tb=16) + multi-tile edge axis (ge=2) --
    verts2, all_edges2, log_e02 = _make_mesh(k2, B=10, V=64, F=600,
                                             offsets=[0, 5, 11], noise=0.1)
    check(verts2, all_edges2, log_e02, False, target_block_bytes=16 * 1024)

    # --- Case 3: multi-block batch axis (B=33 -> gb=5) + padded batch rows ----
    verts3, all_edges3, log_e03 = _make_mesh(k3, B=33, V=32, F=100,
                                             offsets=[0, 7, 13], noise=0.2)
    check(verts3, all_edges3, log_e03, False)

    print("KERNEL_OK")
</pallas_src>

<mosaic_0001>
module attributes {stable_mosaic.version = 11 : i64} {
  func.func @_edge_loss_kernel(%arg0: i32, %arg1: i32, %arg2: memref<2x1x128xf32, #tpu.memory_space<vmem>>, %arg3: memref<1x1x1x128xf32, #tpu.memory_space<vmem>>) attributes {dimension_semantics = [#tpu.dimension_semantics<parallel>, #tpu.dimension_semantics<parallel>], iteration_bounds = array<i64: 1, 1>, scalar_prefetch = 0 : i64, scratch_operands = 0 : i64, tpu.core_type = #tpu.core_type<tc>, window_params = [{transform_indices = @transform_0, window_bounds = array<i64: 2, 1, 128>}, {transform_indices = @transform_1, window_bounds = array<i64: 1, 1, 1, 128>}]} {
    %c0 = arith.constant 0 : index
    %c0_0 = arith.constant 0 : index
    %c0_1 = arith.constant 0 : index
    %0 = vector.load %arg2[%c0, %c0_0, %c0_1] : memref<2x1x128xf32, #tpu.memory_space<vmem>>, vector<2x1x128xf32>
    %1 = math.log %0 : vector<2x1x128xf32>
    %cst = arith.constant 5.000000e-01 : f32
    %2 = vector.broadcast %cst : f32 to vector<2x1x128xf32>
    %3 = arith.mulf %2, %1 : vector<2x1x128xf32>
    %4 = math.absf %3 : vector<2x1x128xf32>
    %cst_2 = arith.constant 0.693147182 : f32
    %5 = vector.broadcast %cst_2 : f32 to vector<2x1x128xf32>
    %6 = arith.subf %4, %5 : vector<2x1x128xf32>
    %cst_3 = arith.constant 0.000000e+00 : f32
    %7 = vector.broadcast %cst_3 : f32 to vector<2x1x128xf32>
    %8 = arith.maximumf %6, %7 : vector<2x1x128xf32>
    %cst_4 = arith.constant dense<0.000000e+00> : vector<1x128xf32>
    %9 = vector.multi_reduction <add>, %8, %cst_4 [0] : vector<2x1x128xf32> to vector<1x128xf32>
    %10 = vector.shape_cast %9 : vector<1x128xf32> to vector<1x1x128xf32>
    %cst_5 = arith.constant dense<0.000000e+00> : vector<1x128xf32>
    %11 = vector.multi_reduction <add>, %10, %cst_5 [1] : vector<1x1x128xf32> to vector<1x128xf32>
    %12 = vector.shape_cast %11 : vector<1x128xf32> to vector<1x1x128xf32>
    %13 = vector.shape_cast %12 : vector<1x1x128xf32> to vector<1x1x1x128xf32>
    %c0_6 = arith.constant 0 : index
    %c0_7 = arith.constant 0 : index
    %c0_8 = arith.constant 0 : index
    %c0_9 = arith.constant 0 : index
    %14 = vector.load %arg3[%c0_6, %c0_7, %c0_8, %c0_9] : memref<1x1x1x128xf32, #tpu.memory_space<vmem>>, vector<1x1x1x128xf32>
    tpu.vector_store %arg3[%c0_6, %c0_7, %c0_8, %c0_9], %13 {strides = array<i32>} : memref<1x1x1x128xf32, #tpu.memory_space<vmem>>, vector<1x1x1x128xf32>,
    return
  }
  func.func @transform_0(%arg0: i32, %arg1: i32) -> (i32, i32, i32) {
    %c0_i32 = arith.constant 0 : i32
    %c0_i32_0 = arith.constant 0 : i32
    return %arg0, %arg1, %c0_i32 : i32, i32, i32
  }
  func.func @transform_1(%arg0: i32, %arg1: i32) -> (i32, i32, i32, i32) {
    %c0_i32 = arith.constant 0 : i32
    %c0_i32_0 = arith.constant 0 : i32
    %c0_i32_1 = arith.constant 0 : i32
    return %arg0, %arg1, %c0_i32, %c0_i32_0 : i32, i32, i32, i32
  }
}

</mosaic_0001>

<llo_original>
// kernel: tpu_custom_call.1
$region0: #{tpu_custom_call.1}
  #allocation0 [shape = 'u32[]', space=smem, size = 0x4, offset = 0x4, fixed_abs, tag = 'smem constant byte address 0x4 - core index']
  #allocation1 [shape = 'u32[144,128]{1,0:T(1,128)}', space=vmem, size = 0x12000, scoped, tag = 'internal scratch']
  %s0 = inlined_call_operand.hbm [shape: f32[2,1,128], index: 0, kind: input, shape index: {}]
  %s1 = inlined_call_operand.hbm [shape: f32[1,1,1,128], index: 1, kind: output, shape index: {}]
  %s2 = sld [smem:[#allocation0]]
  $region18: #{tpu_custom_call.1} parent=0
    _
  %s4 = ssub.s32 1, %s2
  %s5 = scalar_select 0, %s4, %s2
  $region1: #{tpu_custom_call.1} parent=0
    #allocation2 [shape = 'u8[1024]{0}', space=vmem, size = 0x400, scoped, tag = 'input window, operand 0, single buffered']
    #allocation3 [shape = 's32[1]{0}', space=sflag, size = 0x4, scoped, tag = 'scoped memory for tpu_custom_call.1']
    #allocation4 [shape = 's32[1]{0}', space=sflag, size = 0x4, scoped, tag = 'scoped memory for tpu_custom_call.1']
    #allocation5 [shape = 'u8[512]{0}', space=vmem, size = 0x400, scoped, tag = 'output window, operand 0, single buffered']
    %6 = vsyncpa [#allocation3], 0
    %7 = vsyncpa [#allocation4], 0
    // Predicated region
    $region2: #{tpu_custom_call.1} parent=1 // pred_check
      _
    $region3: #{tpu_custom_call.1} parent=1 // pred_check_branch
      %9 = sbr.rel (0) target = $region5
    $region4: #{tpu_custom_call.1} parent=1 // pred_region
      %s11 = ssub.s32 32, 32
      %12 = vsyncadd [#allocation3], %s11
      %s13 = sshll.u32 [#allocation2], 4
      %s14 = int_to_ptr.vmem [resolvable:$true] %s13
      %19 = dma.hbm_to_vmem [thread:$0]  %s0, 32, %s14, [#allocation3], 16, 16, 1
    $region5: #{tpu_custom_call.1} parent=1 // pred_fallthru
      _
    // Predicated region
    $region6: #{tpu_custom_call.1} parent=1 // pred_check
      _
    $region7: #{tpu_custom_call.1} parent=1 // pred_check_branch
      %21 = sbr.rel (0) target = $region9
    $region8: #{tpu_custom_call.1} parent=1 // pred_region
      %22 = dma.done [#allocation3], 32
    $region9: #{tpu_custom_call.1} parent=1 // pred_fallthru
      _
    %v23 = vld [vmem:[#allocation2] sm:$0x1]
    %v24 = vld [vmem:[#allocation2 + $0x1] sm:$0x1]
    %v25 = vlog2.pop %v23
    %v26 = vmul.f32 %v25, 0.6931472
    %v27 = vlog2.pop %v24
    %v28 = vmul.f32 %v27, 0.6931472
    %v29 = vmul.f32 %v26, 0.5
    %v30 = vmul.f32 %v28, 0.5
    %v31 = vand.u32 2147483647, %v29
    %v32 = vand.u32 2147483647, %v30
    %v33 = vsub.f32 %v31, 0.6931472
    %v34 = vsub.f32 %v32, 0.6931472
    %v35 = vmax.f32 %v33, 0.0
    %v36 = vmax.f32 %v34, 0.0
    %vm37 = vcmask 1040384
    %v38 = vsel %vm37, %v35, 0.0
    %v39 = vsel %vm37, %v36, 0.0
    %v40 = vadd.f32 %v38, %v39
    %v41 = vadd.f32 %v40, 0.0
    %42 = vst [vmem:[#allocation5] sm:$0x1] %v41
    // Predicated region
    $region10: #{tpu_custom_call.1} parent=1 // pred_check
      _
    $region11: #{tpu_custom_call.1} parent=1 // pred_check_branch
      %44 = sbr.rel (0) target = $region13
    $region12: #{tpu_custom_call.1} parent=1 // pred_region
      %s46 = ssub.s32 16, 16
      %47 = vsyncadd [#allocation4], %s46
      %s49 = sshll.u32 [#allocation5], 4
      %s50 = int_to_ptr.vmem [resolvable:$true] %s49
      %52 = dma.vmem_to_hbm [thread:$0]  %s50, 16, %s1, [#allocation4]
    $region13: #{tpu_custom_call.1} parent=1 // pred_fallthru
      _
    // Predicated region
    $region14: #{tpu_custom_call.1} parent=1 // pred_check
      _
    $region15: #{tpu_custom_call.1} parent=1 // pred_check_branch
      %54 = sbr.rel (0) target = $region17
    $region16: #{tpu_custom_call.1} parent=1 // pred_region
      %55 = dma.done [#allocation4], 16
    $region17: #{tpu_custom_call.1} parent=1 // pred_fallthru
      _
    %56 = vsyncpa [#allocation3], 1
    %57 = vsyncpa [#allocation4], 1

</llo_original>
